<compile_context>
chip_gen: v7x
topology: tpu7x:2x2x1
jax: 0.10.0
libtpu: 0.0.40
codegen_flags: <defaults>
</compile_context>

<pallas_src>
import functools

import jax
import jax.numpy as jnp
from jax.experimental import pallas as pl
from jax.experimental.pallas import tpu as pltpu

EPS = 1e-5  # PyTorch BatchNorm2d default eps


def _round_up(x, m):
    return (x + m - 1) // m * m


def _cdiv(a, b):
    return (a + b - 1) // b


# --------------------------- pass 1: Gram statistics -------------------------
def _gram_kernel(p_ref, g_ref):
    """Per-batch Gram matrix of the augmented patches, over spatial tiles.

    p_ref: (1, K1, TM) augmented im2col tile (last row = validity ones,
                       zero in padded columns), spatial on lanes.
    g_ref: (1, K1, K1) resident per-batch accumulator  sum_m p_m p_m^T.
    """
    @pl.when(pl.program_id(1) == 0)
    def _():
        g_ref[...] = jnp.zeros_like(g_ref)

    p = p_ref[0]  # (K1, TM)
    # p @ p.T with contraction on the lane axis of both operands.
    g_ref[0] += jax.lax.dot_general(
        p, p, (((1,), (1,)), ((), ())), preferred_element_type=jnp.float32)


# ------------------ pass 2: conv + fused (BatchNorm * 2) affine --------------
def _conv_affine_kernel(m_total, k_in, p_ref, w_ref, g_ref, gam_ref, bet_ref,
                        out_ref):
    """Emit  2 * BN(conv(x))  for one (batch, spatial-tile) block.

    p_ref:   (1, K1, TM)  augmented patches tile
    w_ref:   (C, K1)      conv weight, last column zero
    g_ref:   (N, K1, K1)  per-batch Gram partials from pass 1
    gam/bet: (C, 1)       BN weight / bias
    out_ref: (1, C, TM)

    BN stats from the Gram matrix (O(C*K1^2) extra work per tile, ~1% of the
    main matmul, hidden under it):
        sum_c   = (w G_ext)[:, K]          sumsq_c = rowwise (w G_ext) . w
    """
    w = w_ref[...]                                   # (C, K1); col K is 0
    g = jnp.sum(g_ref[...], axis=0)                  # (K1, K1) reduce batch partials

    wg = jnp.dot(w, g, preferred_element_type=jnp.float32)       # (C, K1)
    sumsq_c = jnp.sum(wg * w, axis=1, keepdims=True)             # (C, 1)
    sum_c = wg[:, k_in:k_in + 1]                                 # (C, 1)

    inv_m = 1.0 / m_total
    mean = sum_c * inv_m
    # TODO(synk): single-pass E[y^2]-E[y]^2 variance can lose precision when
    # |mean| >> std; fine for this module's near-zero-mean activations.
    var = jnp.maximum(sumsq_c * inv_m - mean * mean, 0.0)
    scale = (2.0 * gam_ref[...]) * jax.lax.rsqrt(var + EPS)       # folds v1+v1
    shift = 2.0 * bet_ref[...] - mean * scale

    y = jnp.dot(w, p_ref[0], preferred_element_type=jnp.float32)  # (C, TM)
    out_ref[0] = (y * scale + shift).astype(out_ref.dtype)


# ------------------------------------ wrapper --------------------------------
def conv_bn_split_forward(x_nchw, weight, bias, gamma, beta, *, tm=4096):
    # Training-mode BatchNorm subtracts the batch mean -> per-channel conv
    # bias cancels exactly, so it is never computed.
    del bias

    N, C_in, H, W = x_nchw.shape
    C_out, C_in_w, KH, KW = weight.shape
    assert C_in == C_in_w
    OH, OW = H - KH + 1, W - KW + 1
    c_keep = C_out - 3                 # split((C_out-3, 3), dim=1)[0]
    assert c_keep >= 1
    K = C_in * KH * KW
    K1 = K + 1                         # + validity-ones row
    OHW = OH * OW

    # --- spatial tile: as big as possible, but keep >= 4 grid steps so a
    # --- 2-TC chip (v7x) gets work on both cores and pipelining can overlap.
    tm = min(_round_up(tm, 128), _round_up(OHW, 128))
    while tm > 128 and N * _cdiv(OHW, tm) < 4:
        tm = max(128, _round_up(tm // 2, 128))
    n_tiles = _cdiv(OHW, tm)
    ohw_pad = n_tiles * tm
    grid = (N, n_tiles)

    # --- im2col glue (plain JAX): (N, K1, ohw_pad), spatial on lanes.
    cols = []
    for ky in range(KH):
        for kx in range(KW):
            cols.append(x_nchw[:, :, ky:ky + OH, kx:kx + OW])
    patches = jnp.stack(cols, axis=2).reshape(N, K, OHW).astype(jnp.float32)
    ones_row = jnp.ones((N, 1, OHW), jnp.float32)         # validity row
    patches = jnp.concatenate([patches, ones_row], axis=1)  # (N, K1, OHW)
    if ohw_pad != OHW:
        # Zero padding (including the ones row) contributes 0 to the Gram
        # sums; stats divide by the true M = N*OHW.
        patches = jnp.pad(patches, ((0, 0), (0, 0), (0, ohw_pad - OHW)))

    # Surviving channels only; last weight column is zero (matches ones row).
    # No row padding: c_keep equals the full array dim, so blocks stay legal.
    w_t = weight[:c_keep].reshape(c_keep, K).astype(jnp.float32)
    w_ext = jnp.concatenate([w_t, jnp.zeros((c_keep, 1), jnp.float32)], axis=1)
    gam = gamma[:c_keep].astype(jnp.float32).reshape(c_keep, 1)
    bet = beta[:c_keep].astype(jnp.float32).reshape(c_keep, 1)

    p_spec = pl.BlockSpec((1, K1, tm), lambda n, m: (n, 0, m))

    # Explicit VMEM budget: double-buffered tiles + headroom, capped below
    # v7x's 64 MiB physical VMEM (fine for v5e/v6e's 128 MiB as well).
    est = 2 * 4 * (K1 * tm + c_keep * tm + c_keep * K1 + N * K1 * K1
                   + 2 * c_keep) + (8 << 20)
    vmem_limit = int(min(max(est, 32 << 20), 48 << 20))

    # --- pass 1: per-batch (K1 x K1) Gram matrix of augmented patches --------
    g_part = pl.pallas_call(
        _gram_kernel,
        out_shape=jax.ShapeDtypeStruct((N, K1, K1), jnp.float32),
        grid=grid,
        in_specs=[p_spec],
        out_specs=pl.BlockSpec((1, K1, K1), lambda n, m: (n, 0, 0)),
        compiler_params=pltpu.CompilerParams(
            dimension_semantics=("parallel", "arbitrary"),
            vmem_limit_bytes=vmem_limit),
    )(patches)

    # --- pass 2: conv tile + fused BN*2 affine; stats folded in-kernel -------
    out = pl.pallas_call(
        functools.partial(_conv_affine_kernel, float(N * OHW), K),
        out_shape=jax.ShapeDtypeStruct((N, c_keep, OHW), jnp.float32),
        grid=grid,
        in_specs=[p_spec,
                  pl.BlockSpec((c_keep, K1), lambda n, m: (0, 0)),
                  pl.BlockSpec((N, K1, K1), lambda n, m: (0, 0, 0)),
                  pl.BlockSpec((c_keep, 1), lambda n, m: (0, 0)),
                  pl.BlockSpec((c_keep, 1), lambda n, m: (0, 0))],
        out_specs=pl.BlockSpec((1, c_keep, tm), lambda n, m: (n, 0, m)),
        compiler_params=pltpu.CompilerParams(
            dimension_semantics=("parallel", "parallel"),
            vmem_limit_bytes=vmem_limit),
    )(patches, w_ext, g_part, gam, bet)

    return out.reshape(N, c_keep, OH, OW)   # free reshape, no transpose/slice


if __name__ == "__main__":
    key = jax.random.PRNGKey(0)
    k_x, k_w, k_b = jax.random.split(key, 3)

    # Scaled-down shapes consistent with the module (orig: x=(3,3,128,128),
    # in_d=256 -> C_out=253, keep 250). Here: in_d=16 -> C_out=13, keep 10.
    in_d = 16
    C_in, KH, KW = 3, 3, 3
    C_out = in_d - 3
    N, H, W = 2, 18, 18  # conv output spatial: 16 x 16 -> OHW=256

    x = jax.random.normal(k_x, (N, C_in, H, W), dtype=jnp.float32)

    # Deterministic params. Conv2d default init: U(-k, k), k = 1/sqrt(fan_in).
    fan_in = C_in * KH * KW
    bound = 1.0 / (fan_in ** 0.5)
    weight = jax.random.uniform(k_w, (C_out, C_in, KH, KW), jnp.float32,
                                -bound, bound)
    bias = jax.random.uniform(k_b, (C_out,), jnp.float32, -bound, bound)
    gamma = jnp.ones((C_out,), jnp.float32)   # BatchNorm weight default
    beta = jnp.zeros((C_out,), jnp.float32)   # BatchNorm bias default

    out = jax.block_until_ready(
        conv_bn_split_forward(x, weight, bias, gamma, beta))

    # Pure-JAX reference (includes the bias; training-mode BN cancels it).
    ref_conv = jax.lax.conv_general_dilated(
        x, weight, (1, 1), "VALID",
        dimension_numbers=("NCHW", "OIHW", "NCHW"))
    ref_conv = ref_conv + bias.reshape(1, C_out, 1, 1)
    mean = jnp.mean(ref_conv, axis=(0, 2, 3), keepdims=True)
    var = jnp.var(ref_conv, axis=(0, 2, 3), keepdims=True)
    ref_bn = ((ref_conv - mean) * jax.lax.rsqrt(var + EPS)
              * gamma.reshape(1, -1, 1, 1) + beta.reshape(1, -1, 1, 1))
    ref = ref_bn[:, :C_out - 3] * 2.0

    assert out.shape == ref.shape == (N, C_out - 3, H - 2, W - 2)
    assert jnp.allclose(out, ref, atol=1e-4, rtol=1e-4)
    print("KERNEL_OK")
</pallas_src>

<mosaic_0001>
module attributes {stable_mosaic.version = 11 : i64} {
  func.func @_gram_kernel(%arg0: i32, %arg1: i32, %arg2: memref<1x28x128xf32, #tpu.memory_space<vmem>>, %arg3: memref<1x28x28xf32, #tpu.memory_space<vmem>>) attributes {dimension_semantics = [#tpu.dimension_semantics<parallel>, #tpu.dimension_semantics<arbitrary>], iteration_bounds = array<i64: 2, 2>, scalar_prefetch = 0 : i64, scratch_operands = 0 : i64, tpu.core_type = #tpu.core_type<tc>, window_params = [{transform_indices = @transform_0, window_bounds = array<i64: 1, 28, 128>}, {transform_indices = @transform_1, window_bounds = array<i64: 1, 28, 28>}]} {
    %c0_i32 = arith.constant 0 : i32
    %0 = arith.cmpi eq, %arg1, %c0_i32 : i32
    %1 = arith.extui %0 : i1 to i32
    %c0_i32_0 = arith.constant 0 : i32
    %2 = arith.cmpi ne, %1, %c0_i32_0 : i32
    scf.if %2 {
      %cst_9 = arith.constant 0.000000e+00 : f32
      %12 = vector.broadcast %cst_9 : f32 to vector<1x28x28xf32>
      %c0_10 = arith.constant 0 : index
      %c0_11 = arith.constant 0 : index
      %c0_12 = arith.constant 0 : index
      %13 = vector.load %arg3[%c0_10, %c0_11, %c0_12] : memref<1x28x28xf32, #tpu.memory_space<vmem>>, vector<1x28x28xf32>
      tpu.vector_store %arg3[%c0_10, %c0_11, %c0_12], %12 {strides = array<i32>} : memref<1x28x28xf32, #tpu.memory_space<vmem>>, vector<1x28x28xf32>,
    } else {
    }
    %c0 = arith.constant 0 : index
    %c0_1 = arith.constant 0 : index
    %c0_2 = arith.constant 0 : index
    %3 = vector.load %arg2[%c0, %c0_1, %c0_2] : memref<1x28x128xf32, #tpu.memory_space<vmem>>, vector<1x28x128xf32>
    %4 = vector.shape_cast %3 : vector<1x28x128xf32> to vector<28x128xf32>
    %c0_3 = arith.constant 0 : index
    %c0_4 = arith.constant 0 : index
    %c0_5 = arith.constant 0 : index
    %5 = vector.load %arg3[%c0_3, %c0_4, %c0_5] : memref<1x28x28xf32, #tpu.memory_space<vmem>>, vector<1x28x28xf32>
    %6 = vector.shape_cast %5 : vector<1x28x28xf32> to vector<28x28xf32>
    %cst = arith.constant dense<0.000000e+00> : vector<28x28xf32>
    %7 = tpu.matmul %4, %4, %cst {dimension_numbers = #tpu.dot_dimension_numbers<[1], [1], [0], [0], [0, 0, 1, 0], [], []>} : vector<28x128xf32>, vector<28x128xf32>, vector<28x28xf32> -> vector<28x28xf32>
    %8 = arith.addf %6, %7 : vector<28x28xf32>
    %c0_6 = arith.constant 0 : index
    %c0_7 = arith.constant 0 : index
    %c0_8 = arith.constant 0 : index
    %9 = vector.load %arg3[%c0_6, %c0_7, %c0_8] : memref<1x28x28xf32, #tpu.memory_space<vmem>>, vector<1x28x28xf32>
    %10 = vector.shape_cast %9 : vector<1x28x28xf32> to vector<28x28xf32>
    %11 = vector.shape_cast %8 : vector<28x28xf32> to vector<1x28x28xf32>
    tpu.vector_store %arg3[%c0_6, %c0_7, %c0_8], %11 {strides = array<i32>} : memref<1x28x28xf32, #tpu.memory_space<vmem>>, vector<1x28x28xf32>,
    return
  }
  func.func @transform_0(%arg0: i32, %arg1: i32) -> (i32, i32, i32) {
    %c0_i32 = arith.constant 0 : i32
    %c0_i32_0 = arith.constant 0 : i32
    return %arg0, %c0_i32, %arg1 : i32, i32, i32
  }
  func.func @transform_1(%arg0: i32, %arg1: i32) -> (i32, i32, i32) {
    %c0_i32 = arith.constant 0 : i32
    %c0_i32_0 = arith.constant 0 : i32
    %c0_i32_1 = arith.constant 0 : i32
    return %arg0, %c0_i32, %c0_i32_0 : i32, i32, i32
  }
}

</mosaic_0001>

<llo_original>
// kernel: tpu_custom_call.1
$region0: #{tpu_custom_call.1}
  #allocation0 [shape = 'u32[]', space=smem, size = 0x4, offset = 0x4, fixed_abs, tag = 'smem constant byte address 0x4 - core index']
  #allocation1 [shape = 'u32[144,128]{1,0:T(1,128)}', space=vmem, size = 0x12000, scoped, tag = 'internal scratch']
  %s0 = inlined_call_operand.vmem [shape: f32[2,28,256], index: 0, kind: input, shape index: {}]
  %s1 = inlined_call_operand.vmem [shape: f32[2,28,28], index: 1, kind: output, shape index: {}]
  %s2 = sld [smem:[#allocation0]]
  $region79: #{tpu_custom_call.1} parent=0
    _
  %s4 = ssub.s32 1, %s2
  %s5 = scalar_select 0, %s4, %s2
  $region1: #{tpu_custom_call.1} parent=0
    #allocation2 [shape = 'u8[32768]{0}', space=vmem, size = 0x8000, scoped, tag = 'input window, operand 0']
    loop: start=0, step=1, limit=6
    $region2: #{tpu_custom_call.1} parent=1 // loop_pre_header
      _
    $region3: #{tpu_custom_call.1} parent=1 // loop_header
      %s7 = sphi 0, %s11
      %p8 = scmp.ge.s32.totalorder %s7, 6
      %s14 = sphi 0, %s26
      %s15 = sphi 0, %s22
      %s16 = sphi 0, %s14
      %s17 = sphi 0, %s15
      %s18 = sphi 0, %s16
      %s19 = sphi 0, %s17
      %s31 = sphi 0, %s33
      %s34 = sphi 0, %s31
      %s35 = sphi 0, %s34
      %s51 = sphi 0, %s35
      %s57 = sphi 0, %s59
      %s60 = sphi 0, %s57
      %s61 = sphi 0, %s60
      %s77 = sphi 0, %s61
    $region4: #{tpu_custom_call.1} parent=1 // loop_header_branch
      %10 = sbr.rel (%p8) target = $region8
    $region5: #{tpu_custom_call.1} parent=1 // loop_body
      %s12 = ssub.s32 %s7, 1
      %s13 = ssub.s32 %s7, 2
      %s20 = sadd.s32 1, %s15
      %p21 = scmp.ge.s32.totalorder %s20, 2
      %s22 = scalar_select %p21, 0, %s20
      %s23 = sadd.s32 1, %s14
      %s24 = scalar_select %p21, %s23, %s14
      %p25 = scmp.ge.s32.totalorder %s24, 2
      %s26 = scalar_select %p25, 0, %s24
      %s27 = ssub.s32 %s14, %s26
      %s28 = ssub.s32 %s15, %s22
      %s29 = sor.u32 %s27, %s28
      %p30 = scmp.eq.s32.totalorder %s29, 0
      %s32 = sadd.s32 %s31, 1
      %s33 = scalar_select %p30, %s31, %s32
      %p36 = pneg %p30
      %p37 = scmp.eq.s32.totalorder %s7, 3
      %p38 = por %p36, %p37
      %p39 = scmp.ne.s32.totalorder %s31, %s34
      %p40 = scmp.eq.s32.totalorder %s7, 0
      %p41 = por %p39, %p40
      %p42 = scmp.ne.s32.totalorder %s31, %s34
      %p43 = scmp.eq.s32.totalorder %s12, 3
      %p44 = por %p42, %p43
      %p45 = scmp.ne.s32.totalorder %s34, %s35
      %p46 = scmp.eq.s32.totalorder %s12, 0
      %p47 = por %p45, %p46
      %p48 = scmp.ne.s32.totalorder %s34, %s35
      %p49 = scmp.eq.s32.totalorder %s13, 3
      %p50 = por %p48, %p49
      %p52 = scmp.ne.s32.totalorder %s35, %s51
      %p53 = scmp.eq.s32.totalorder %s13, 0
      %p54 = por %p52, %p53
      %s55 = ssub.s32 %s14, %s26
      %p56 = scmp.eq.s32.totalorder %s55, 0
      %s58 = sadd.s32 %s57, 1
      %s59 = scalar_select %p56, %s57, %s58
      %p62 = pneg %p56
      %p63 = scmp.eq.s32.totalorder %s7, 3
      %p64 = por %p62, %p63
      %p65 = scmp.ne.s32.totalorder %s57, %s60
      %p66 = scmp.eq.s32.totalorder %s7, 0
      %p67 = por %p65, %p66
      %p68 = scmp.ne.s32.totalorder %s57, %s60
      %p69 = scmp.eq.s32.totalorder %s12, 3
      %p70 = por %p68, %p69
      %p71 = scmp.ne.s32.totalorder %s60, %s61
      %p72 = scmp.eq.s32.totalorder %s12, 0
      %p73 = por %p71, %p72
      %p74 = scmp.ne.s32.totalorder %s60, %s61
      %p75 = scmp.eq.s32.totalorder %s13, 3
      %p76 = por %p74, %p75
      %p78 = scmp.ne.s32.totalorder %s61, %s77
      %p79 = scmp.eq.s32.totalorder %s13, 0
      %p80 = por %p78, %p79
      %p81 = scmp.le.s32.totalorder 1, %s7
      %p82 = scmp.lt.s32.totalorder %s7, 5
      %p83 = pnand %p81, %p82
      %p84 = pneg %p83
      // Predicated region
      $region9: #{tpu_custom_call.1} parent=5 // pred_check
        _
      $region10: #{tpu_custom_call.1} parent=5 // pred_check_branch
        %86 = sbr.rel (%p83) target = $region12
      $region11: #{tpu_custom_call.1} parent=5 // pred_region
        %s87 = ssub.s32 %s7, 1
      $region12: #{tpu_custom_call.1} parent=5 // pred_fallthru
        _
      %p88 = scmp.lt.s32.totalorder %s7, 4
      // Predicated region
      $region13: #{tpu_custom_call.1} parent=5 // pred_check
        %p89 = pneg %p88
      $region14: #{tpu_custom_call.1} parent=5 // pred_check_branch
        %91 = sbr.rel (%p89) target = $region16
      $region15: #{tpu_custom_call.1} parent=5 // pred_region
        // Predicated region
        $region17: #{tpu_custom_call.1} parent=15 // pred_check
          %p92 = pneg %p41
        $region18: #{tpu_custom_call.1} parent=15 // pred_check_branch
          %94 = sbr.rel (%p92) target = $region20
        $region19: #{tpu_custom_call.1} parent=15 // pred_region
          %s95 = sand.u32 %s31, 1
          %s96 = sand.u32 %s31, 1
          %s97 = smul.addr %s96, 32
          %s98 = scalar_lea.vmem [#allocation2], %s97
          %s99 = smul.addr %s14, 8
          %s100 = sadd.s32 %s15, %s99
          %s101 = smul.addr %s100, 8
          %s102 = scalar_lea.vmem %s0, %s101
          // Predicated region
          $region21: #{tpu_custom_call.1} parent=19 // pred_check
            _
          $region22: #{tpu_custom_call.1} parent=19 // pred_check_branch
            %104 = sbr.rel (0) target = $region24
          $region23: #{tpu_custom_call.1} parent=19 // pred_region
            // Predicated region
            $region25: #{tpu_custom_call.1} parent=23 // pred_check
              _
            $region26: #{tpu_custom_call.1} parent=23 // pred_check_branch
              %106 = sbr.rel (0) target = $region28
            $region27: #{tpu_custom_call.1} parent=23 // pred_region
              // Predicated region
              $region40: #{tpu_custom_call.1} parent=27 // pred_check
                _
              $region41: #{tpu_custom_call.1} parent=27 // pred_check_branch
                %127 = sbr.rel (0) target = $region43
              $region42: #{tpu_custom_call.1} parent=27 // pred_region
                loop: start=0, step=1, limit=1
                $region44: #{tpu_custom_call.1} parent=42 // loop_pre_header
                  _
                $region45: #{tpu_custom_call.1} parent=42 // loop_header
                  %s129 = sphi 0, %s133
                  %p130 = scmp.ge.s32.totalorder %s129, 1
                  %s134 = sphi %s102, %s102
                  %s135 = sphi %s98, %s98
                $region46: #{tpu_custom_call.1} parent=42 // loop_header_branch
                  %132 = sbr.rel (%p130) target = $region50
                $region47: #{tpu_custom_call.1} parent=42 // loop_body
                  %v136 = vld [vmem:[%s134] sm:$0xff]
                  %137 = vst [vmem:[%s135] sm:$0xff] %v136
                  %v138 = vld [vmem:[%s134 + $0x10] sm:$0xff]
                  %139 = vst [vmem:[%s135 + $0x8] sm:$0xff] %v138
                  %v140 = vld [vmem:[%s134 + $0x20] sm:$0xff]
                  %141 = vst [vmem:[%s135 + $0x10] sm:$0xff] %v140
                  %v142 = vld [vmem:[%s134 + $0x30] sm:$0xff]
                  %143 = vst [vmem:[%s135 + $0x18] sm:$0xff] %v142
                $region48: #{tpu_custom_call.1} parent=42 // loop_footer
                  %s133 = sadd.s32 1, %s129
                $region49: #{tpu_custom_call.1} parent=42 // loop_footer_branch
                  %128 = sbr.rel target = $region45
                $region50: #{tpu_custom_call.1} parent=42 // loop_exit
                  _
              $region43: #{tpu_custom_call.1} parent=27 // pred_fallthru
                _
              // Predicated region
              $region51: #{tpu_custom_call.1} parent=27 // pred_check
                _
              $region52: #{tpu_custom_call.1} parent=27 // pred_check_branch
                %145 = sbr.rel target = $region54
              $region53: #{tpu_custom_call.1} parent=27 // pred_region
                _
              $region54: #{tpu_custom_call.1} parent=27 // pred_fallthru
                _
            $region28: #{tpu_custom_call.1} parent=23 // pred_fallthru
              _
            // Predicated region
            $region29: #{tpu_custom_call.1} parent=23 // pred_check
              _
            $region30: #{tpu_custom_call.1} parent=23 // pred_check_branch
              %108 = sbr.rel target = $region32
            $region31: #{tpu_custom_call.1} parent=23 // pred_region
              loop: start=0, step=1, limit=1
              $region33: #{tpu_custom_call.1} parent=31 // loop_pre_header
                _
              $region34: #{tpu_custom_call.1} parent=31 // loop_header
                %s111 = sphi 0, %s115
                %p112 = scmp.ge.s32.totalorder %s111, 1
                %s116 = sphi %s102, %s102
                %s117 = sphi %s98, %s98
              $region35: #{tpu_custom_call.1} parent=31 // loop_header_branch
                %114 = sbr.rel (%p112) target = $region39
              $region36: #{tpu_custom_call.1} parent=31 // loop_body
                %v118 = vld [vmem:[%s116] sm:$0xff]
                %119 = vst [vmem:[%s117] sm:$0xff] %v118
                %v120 = vld [vmem:[%s116 + $0x10] sm:$0xff]
                %121 = vst [vmem:[%s117 + $0x8] sm:$0xff] %v120
                %v122 = vld [vmem:[%s116 + $0x20] sm:$0xff]
                %123 = vst [vmem:[%s117 + $0x10] sm:$0xff] %v122
                %v124 = vld [vmem:[%s116 + $0x30] sm:$0xff]
                %125 = vst [vmem:[%s117 + $0x18] sm:$0xff] %v124
              $region37: #{tpu_custom_call.1} parent=31 // loop_footer
                %s115 = sadd.s32 1, %s111
              $region38: #{tpu_custom_call.1} parent=31 // loop_footer_branch
                %110 = sbr.rel target = $region34
              $region39: #{tpu_custom_call.1} parent=31 // loop_exit
                _
            $region32: #{tpu_custom_call.1} parent=23 // pred_fallthru
              _
          $region24: #{tpu_custom_call.1} parent=19 // pred_fallthru
            _
          %146 = vnop
        $region20: #{tpu_custom_call.1} parent=15 // pred_fallthru
          _
      $region16: #{tpu_custom_call.1} parent=5 // pred_fallthru
        _
      %p147 = scmp.le.s32.totalorder 1, %s7
      %p148 = scmp.lt.s32.totalorder %s7, 5
      %p149 = pnand %p147, %p148
      %p150 = pneg %p149
      // Predicated region
      $region55: #{tpu_custom_call.1} parent=5 // pred_check
        _
      $region56: #{tpu_custom_call.1} parent=5 // pred_check_branch
        %152 = sbr.rel (%p149) target = $region58
      $region57: #{tpu_custom_call.1} parent=5 // pred_region
        %s153 = ssub.s32 %s7, 1
        %s154 = sand.u32 %s34, 1
        %s155 = sand.u32 %s34, 1
        %s156 = smul.addr %s155, 32
        %s157 = scalar_lea.vmem [#allocation2], %s156
        // Predicated region
        $region59: #{tpu_custom_call.1} parent=57 // pred_check
          %p158 = pneg %p47
        $region60: #{tpu_custom_call.1} parent=57 // pred_check_branch
          %160 = sbr.rel (%p158) target = $region62
        $region61: #{tpu_custom_call.1} parent=57 // pred_region
          _
        $region62: #{tpu_custom_call.1} parent=57 // pred_fallthru
          _
        %s161 = sand.u32 %s34, 1
        %s162 = sand.u32 %s34, 1
        %s163 = smul.addr %s162, 32
        %s164 = scalar_lea.vmem [#allocation2], %s163
        %p165 = pneg %p47
        %p166 = pneg %p44
        %p167 = pneg %p73
        %p168 = pneg %p70
        %p169 = scmp.lt.s32.totalorder %s16, 1
        %s170 = scalar_select %p169, %s16, 1
        %s171 = smul.addr %s170, 4
        %s172 = smul.addr %s171, 8
        %s173 = scalar_lea.vmem %s1, %s172
        %p174 = scmp.lt.s32.totalorder %s16, 1
        %s175 = scalar_select %p174, %s16, 1
        %s176 = smul.addr %s175, 4
        %s177 = smul.addr %s176, 8
        %s178 = scalar_lea.vmem %s1, %s177
        %p179 = scmp.eq.s32.totalorder %s17, 0
        // Predicated region
        $region63: #{tpu_custom_call.1} parent=57 // pred_check
          %p180 = pneg %p179
        $region64: #{tpu_custom_call.1} parent=57 // pred_check_branch
          %182 = sbr.rel (%p180) target = $region66
        $region65: #{tpu_custom_call.1} parent=57 // pred_region
          %vm183 = vcmask 228352
          %184 = vst.msk [vmem:[%s178] sm:$0xff] %vm183, 0.0
          %185 = vst.msk [vmem:[%s178 + $0x8] sm:$0xff] %vm183, 0.0
          %186 = vst.msk [vmem:[%s178 + $0x10] sm:$0xff] %vm183, 0.0
          %vm187 = vcmask 224256
          %188 = vst.msk [vmem:[%s178 + $0x18] sm:$0xf] %vm187, 0.0
        $region66: #{tpu_custom_call.1} parent=57 // pred_fallthru
          _
        %v189 = vld [vmem:[%s157] sm:$0xff]
        %v190 = vld [vmem:[%s157 + $0x8] sm:$0xff]
        %v191 = vld [vmem:[%s157 + $0x10] sm:$0xff]
        %v192 = vld [vmem:[%s157 + $0x18] sm:$0xf]
        %v193 = vld [vmem:[%s178] sm:$0xff]
        %v194 = vld [vmem:[%s178 + $0x8] sm:$0xff]
        %v195 = vld [vmem:[%s178 + $0x10] sm:$0xff]
        %v196 = vld [vmem:[%s178 + $0x18] sm:$0xf]
        %197 = vmatprep.subr.mxu0 0.0
        %198 = vmatpush1.xpose.msra.mxu0 %v189
        %199 = vmatprep.subr.mxu0 0.0
        %200 = vmatpush1.xpose.msra.mxu0 %v190
        %201 = vmatprep.subr.mxu0 0.0
        %202 = vmatpush1.xpose.msra.mxu0 %v191
        %203 = vmatprep.subr.mxu0 0.0
        %204 = vmatpush1.xpose.msra.mxu0 %v192
        %205 = vmatprep.subr.mxu0 0.0
        %206 = vmatpush1.xpose.msra.mxu0 0.0
        %207 = vmatprep.subr.mxu0 0.0
        %208 = vmatpush1.xpose.msra.mxu0 0.0
        %209 = vmatprep.subr.mxu0 0.0
        %210 = vmatpush1.xpose.msra.mxu0 0.0
        %211 = vmatprep.subr.mxu0 0.0
        %212 = vmatpush1.xpose.msra.mxu0 0.0
        %213 = vmatprep.subr.mxu0 0.0
        %214 = vmatpush1.xpose.msra.mxu0 0.0
        %215 = vmatprep.subr.mxu0 0.0
        %216 = vmatpush1.xpose.msra.mxu0 0.0
        %217 = vmatprep.subr.mxu0 0.0
        %218 = vmatpush1.xpose.msra.mxu0 0.0
        %219 = vmatprep.subr.mxu0 0.0
        %220 = vmatpush1.xpose.msra.mxu0 0.0
        %221 = vmatprep.subr.mxu0 0.0
        %222 = vmatpush1.xpose.msra.mxu0 0.0
        %223 = vmatprep.subr.mxu0 0.0
        %224 = vmatpush1.xpose.msra.mxu0 0.0
        %225 = vmatprep.subr.mxu0 0.0
        %226 = vmatpush1.xpose.msra.mxu0 0.0
        %227 = vmatprep.subr.mxu0 0.0
        %228 = vmatpush1.xpose.msra.mxu0 0.0
        %229 = vmatprep.subr.mxu0 0.0
        %230 = vmatpush1.xpose.msra.mxu0 0.0
        %231 = vmatprep.subr.mxu0 0.0
        %232 = vmatpush1.xpose.msra.mxu0 0.0
        %233 = vmatprep.subr.mxu0 0.0
        %234 = vmatpush1.xpose.msra.mxu0 0.0
        %235 = vmatprep.subr.mxu0 0.0
        %236 = vmatpush1.xpose.msra.mxu0 0.0
        %237 = vmatprep.subr.mxu0 0.0
        %238 = vmatpush1.xpose.msra.mxu0 0.0
        %239 = vmatprep.subr.mxu0 0.0
        %240 = vmatpush1.xpose.msra.mxu0 0.0
        %241 = vmatprep.subr.mxu0 0.0
        %242 = vmatpush1.xpose.msra.mxu0 0.0
        %243 = vmatprep.subr.mxu0 0.0
        %244 = vmatpush1.xpose.msra.mxu0 0.0
        %245 = vmatprep.subr.mxu0 0.0
        %246 = vmatpush1.xpose.msra.mxu0 0.0
        %247 = vmatprep.subr.mxu0 0.0
        %248 = vmatpush1.xpose.msra.mxu0 0.0
        %249 = vmatprep.subr.mxu0 0.0
        %250 = vmatpush1.xpose.msra.mxu0 0.0
        %251 = vmatprep.subr.mxu0 0.0
        %252 = vmatpush1.xpose.msra.mxu0 0.0
        %253 = vmatprep.subr.mxu0 0.0
        %254 = vmatpush1.xpose.msra.mxu0 0.0
        %255 = vmatprep.subr.mxu0 0.0
        %256 = vmatpush1.xpose.msra.mxu0 0.0
        %257 = vmatprep.subr.mxu0 0.0
        %258 = vmatpush1.xpose.msra.mxu0 0.0
        %259 = vmatprep.subr.mxu0 0.0
        %260 = vmatpush1.xpose.msra.mxu0 0.0
        %261 = vmatprep.mubr.f32.mxu0 0.0
        %262 = vmatmul.mubr.f32.gmra.mrb[0].mxu0 %v189
        %v263 = vpop.f32.mrb[0].mxu0
        %v264 = vadd.f32 0.0, %v263
        %v265 = vpop.f32.mrb[0].mxu0
        %266 = vmatprep.mubr.f32.mxu0 0.0
        %267 = vmatmul.mubr.f32.gmra.mrb[0].mxu0 %v190
        %v268 = vpop.f32.mrb[0].mxu0
        %v269 = vadd.f32 0.0, %v268
        %v270 = vpop.f32.mrb[0].mxu0
        %271 = vmatprep.mubr.f32.mxu0 0.0
        %272 = vmatmul.mubr.f32.gmra.mrb[0].mxu0 %v191
        %v273 = vpop.f32.mrb[0].mxu0
        %v274 = vadd.f32 0.0, %v273
        %v275 = vpop.f32.mrb[0].mxu0
        %276 = vmatprep.mubr.f32.mxu0 0.0
        %277 = vmatmul.mubr.f32.gmra.mrb[0].mxu0 %v192
        %v278 = vpop.f32.mrb[0].mxu0
        %v279 = vadd.f32 0.0, %v278
        %v280 = vpop.f32.mrb[0].mxu0
        %281 = vdwg.mxu0
        %v282 = vadd.f32 %v193, %v264
        %v283 = vadd.f32 %v194, %v269
        %v284 = vadd.f32 %v195, %v274
        %v285 = vadd.f32 %v196, %v279
        %vm286 = vcmask 228352
        %287 = vst.msk [vmem:[%s178] sm:$0xff] %vm286, %v282
        %288 = vst.msk [vmem:[%s178 + $0x8] sm:$0xff] %vm286, %v283
        %289 = vst.msk [vmem:[%s178 + $0x10] sm:$0xff] %vm286, %v284
        %vm290 = vcmask 224256
        %291 = vst.msk [vmem:[%s178 + $0x18] sm:$0xf] %vm290, %v285
        %p292 = scmp.lt.s32.totalorder %s16, 1
        %s293 = scalar_select %p292, %s16, 1
        %s294 = smul.addr %s293, 4
        %s295 = smul.addr %s294, 8
        %s296 = scalar_lea.vmem %s1, %s295
        // Predicated region
        $region67: #{tpu_custom_call.1} parent=57 // pred_check
          %p297 = pneg %p70
        $region68: #{tpu_custom_call.1} parent=57 // pred_check_branch
          %299 = sbr.rel (%p297) target = $region70
        $region69: #{tpu_custom_call.1} parent=57 // pred_region
          _
        $region70: #{tpu_custom_call.1} parent=57 // pred_fallthru
          _
      $region58: #{tpu_custom_call.1} parent=5 // pred_fallthru
        _
      %p300 = scmp.le.s32.totalorder 2, %s7
      // Predicated region
      $region71: #{tpu_custom_call.1} parent=5 // pred_check
        %p301 = pneg %p300
      $region72: #{tpu_custom_call.1} parent=5 // pred_check_branch
        %303 = sbr.rel (%p301) target = $region74
      $region73: #{tpu_custom_call.1} parent=5 // pred_region
        %s304 = ssub.s32 %s7, 2
        // Predicated region
        $region75: #{tpu_custom_call.1} parent=73 // pred_check
          %p305 = pneg %p76
        $region76: #{tpu_custom_call.1} parent=73 // pred_check_branch
          %307 = sbr.rel (%p305) target = $region78
        $region77: #{tpu_custom_call.1} parent=73 // pred_region
          %p308 = scmp.lt.s32.totalorder %s18, 1
          %s309 = scalar_select %p308, %s18, 1
          %s310 = smul.addr %s309, 4
          %s311 = smul.addr %s310, 8
          %s312 = scalar_lea.vmem %s1, %s311
        $region78: #{tpu_custom_call.1} parent=73 // pred_fallthru
          _
      $region74: #{tpu_custom_call.1} parent=5 // pred_fallthru
        _
    $region6: #{tpu_custom_call.1} parent=1 // loop_footer
      %s11 = sadd.s32 1, %s7
    $region7: #{tpu_custom_call.1} parent=1 // loop_footer_branch
      %6 = sbr.rel target = $region3
    $region8: #{tpu_custom_call.1} parent=1 // loop_exit
      _

</llo_original>
